<compile_context>
chip_gen: v7x
topology: tpu7x:2x2x1
jax: 0.10.0
libtpu: 0.0.40
codegen_flags: <defaults>
</compile_context>

<pallas_src>
import functools
import numpy as np
import jax
import jax.numpy as jnp
from jax.experimental import pallas as pl
from jax.experimental.pallas import tpu as pltpu  # noqa: F401

XMAX = 1.0
XMIN = -1.0
YMAX = 0.5
YMIN = -0.5


# ---------------------------------------------------------------------------
# Kernel 1: probas = 1 - softmax(pred_logits, axis=-1)[..., -1]
# Input is (C, Q) (classes on sublanes, queries on lanes); output is (1, Q).
# ---------------------------------------------------------------------------
def _probas_kernel(logits_ref, probas_ref):
    logits = logits_ref[...]                         # (C, Q) float32
    m = jnp.max(logits, axis=0, keepdims=True)       # (1, Q)
    e = jnp.exp(logits - m)
    denom = jnp.sum(e, axis=0, keepdims=True)        # (1, Q)
    c = logits_ref.shape[0]
    last = e[c - 1:c, :]                             # "no-object" class row
    probas_ref[...] = 1.0 - last / denom


def filter_probas(pred_logits):
    """probas = 1 - softmax(pred_logits, -1)[:, -1], returned as a (Q,) vector."""
    q, c = pred_logits.shape
    logits = pred_logits if pred_logits.dtype == jnp.float32 else pred_logits.astype(jnp.float32)
    logits_t = logits.T                              # (C, Q): queries on the lane axis
    out = pl.pallas_call(
        _probas_kernel,
        grid=(1,),
        out_shape=jax.ShapeDtypeStruct((1, q), jnp.float32),
        in_specs=[pl.BlockSpec((c, q), lambda i: (0, 0))],
        out_specs=pl.BlockSpec((1, q), lambda i: (0, 0)),
    )(logits_t)
    return out[0]


# ---------------------------------------------------------------------------
# Kernel 2: fused box geometry.
#   pick  = boxes @ M_pick                                     (rescale_bboxes)
#   place = clamp(boxes @ M_place + off_place, 0, [W,H,W,H])   (rescale ∘ pack ∘
#                                                               unpack ∘ clamp)
# params (10, 4): rows 0:4 = M_pick, rows 4:8 = M_place, row 8 = off_place,
#                 row 9 = clamp upper bound.  4x4 contraction is done with
#                 unrolled VPU broadcast multiply-adds (no MXU).
# ---------------------------------------------------------------------------
def _fused_box_kernel(boxes_ref, params_ref, pick_ref, place_ref):
    b = boxes_ref[...]                               # (N, 4) cxcywh in [0, 1]
    pick = b[:, 0:1] * params_ref[0:1, :]
    place = b[:, 0:1] * params_ref[4:5, :]
    for k in range(1, 4):                            # unrolled FMAs on (N,4) slabs
        pick = pick + b[:, k:k + 1] * params_ref[k:k + 1, :]
        place = place + b[:, k:k + 1] * params_ref[4 + k:5 + k, :]
    place = place + params_ref[8:9, :]
    pick_ref[...] = pick                             # no clamp on pick boxes
    place_ref[...] = jnp.minimum(jnp.maximum(place, 0.0), params_ref[9:10, :])


@functools.lru_cache(maxsize=None)
def _box_transform_params(height, width):
    """Pre-composed affine maps + clamp bound, cached per (H, W)."""
    h, w = float(height), float(width)
    sx, sy = (XMAX - XMIN), (YMAX - YMIN)
    # rescale_bboxes: cxcywh in [0,1] -> xyxy pixels
    m_r = np.array([[w,      0.0,   w,     0.0],
                    [0.0,    h,     0.0,   h],
                    [-w / 2, 0.0,   w / 2, 0.0],
                    [0.0,   -h / 2, 0.0,   h / 2]], np.float64)
    # _pack_boxes_for_ebm: xyxy pixels -> EBM [cx, cy, bw, bh]
    m_p = np.array([[sx / (2 * w), 0.0,          -1.0 / w, 0.0],
                    [0.0,          sy / (2 * h),  0.0,    -1.0 / h],
                    [sx / (2 * w), 0.0,           1.0 / w, 0.0],
                    [0.0,          sy / (2 * h),  0.0,     1.0 / h]], np.float64)
    o_p = np.array([XMIN, YMIN, 0.0, 0.0], np.float64)
    # _unpack_boxes_from_ebm: EBM [cx, cy, bw, bh] -> xyxy pixels
    m_u = np.array([[w / sx,  0.0,    w / sx, 0.0],
                    [0.0,     h / sy, 0.0,    h / sy],
                    [-w / 2,  0.0,    w / 2,  0.0],
                    [0.0,    -h / 2,  0.0,    h / 2]], np.float64)
    o_u = np.array([-XMIN * w / sx, -YMIN * h / sy,
                    -XMIN * w / sx, -YMIN * h / sy], np.float64)
    # TODO(synk): langevin(ebm_dict, ...) EBM sampling (external learned nets)
    # sits between pack and unpack; treated as identity, which makes this
    # pre-composition exact since the intermediate clamps are +/-inf no-ops.
    m_place = m_r @ m_p @ m_u
    o_place = o_p @ m_u + o_u
    hi = np.array([w, h, w, h], np.float64)          # clamp_boxes_torch bounds
    params = np.concatenate([m_r, m_place, o_place[None, :], hi[None, :]],
                            axis=0).astype(np.float32)    # (10, 4)
    return jnp.asarray(params)


def fused_box_transform(sel_boxes, height, width):
    n = sel_boxes.shape[0]
    if sel_boxes.dtype != jnp.float32:
        sel_boxes = sel_boxes.astype(jnp.float32)
    params = _box_transform_params(int(height), int(width))
    return pl.pallas_call(
        _fused_box_kernel,
        grid=(1,),
        out_shape=(jax.ShapeDtypeStruct((n, 4), jnp.float32),
                   jax.ShapeDtypeStruct((n, 4), jnp.float32)),
        in_specs=[pl.BlockSpec((n, 4), lambda i: (0, 0)),
                  pl.BlockSpec((10, 4), lambda i: (0, 0))],
        out_specs=(pl.BlockSpec((n, 4), lambda i: (0, 0)),
                   pl.BlockSpec((n, 4), lambda i: (0, 0))),
    )(sel_boxes, params)


# ---------------------------------------------------------------------------
# Forward pass (simplified NS_Transporter program: filter -> binaryEBM path).
# Seq2Tree parser, bdetr backbone/transformer, EBM langevin sampler and wandb
# logging are external modules outside the tensor hot path.
# ---------------------------------------------------------------------------
def ns_transporter_forward(pred_logits, pred_boxes_cxcywh, height, width, topk=4):
    # _filter_pred: score queries, keep the best ones, map to pixel boxes.
    # TODO(synk): PyTorch keeps probas > 0.7 (dynamic count); static top-k is
    # used here so shapes stay static on TPU.
    probas = filter_probas(pred_logits)                      # (Q,)
    order = jax.lax.top_k(probas, topk)[1]                   # glue: top-k selection
    sel_boxes = jnp.take(pred_boxes_cxcywh, order, axis=0)   # (topk, 4) cxcywh in [0,1]

    # One fused kernel: rescale (pick) and rescale∘pack∘[EBM id]∘unpack+clamp (place).
    pick_boxes, place_boxes = fused_box_transform(sel_boxes, height, width)
    return pick_boxes, place_boxes


if __name__ == "__main__":
    key = jax.random.PRNGKey(0)
    H, W = 16, 16            # image spatial size (img.shape[:2])
    Q, C = 8, 16             # detector queries / classes (last class = no-object)
    TOPK = 4

    k1, k2 = jax.random.split(key)
    pred_logits = jax.random.normal(k1, (Q, C), jnp.float32)
    pred_boxes = jax.random.uniform(k2, (Q, 4), jnp.float32, minval=0.1, maxval=0.6)

    pick_boxes, place_boxes = ns_transporter_forward(pred_logits, pred_boxes, H, W, topk=TOPK)
    jax.block_until_ready((pick_boxes, place_boxes))

    # ---------------- pure-numpy reference of the original (un-fused) pipeline ----------------
    logits_np = np.asarray(pred_logits, np.float64)
    e = np.exp(logits_np - logits_np.max(-1, keepdims=True))
    probas_np = 1.0 - e[:, -1] / e.sum(-1)
    got_probas = np.asarray(filter_probas(pred_logits))
    np.testing.assert_allclose(got_probas, probas_np, rtol=1e-5, atol=1e-5)

    order_np = np.argsort(-probas_np)[:TOPK]
    sel = np.asarray(pred_boxes, np.float64)[order_np]
    cx, cy, bw, bh = sel[:, 0], sel[:, 1], sel[:, 2], sel[:, 3]
    # rescale_bboxes
    pix = np.stack([(cx - bw / 2) * W, (cy - bh / 2) * H,
                    (cx + bw / 2) * W, (cy + bh / 2) * H], -1)
    # _pack_boxes_for_ebm
    b = pix.copy()
    b[:, (0, 2)] /= W
    b[:, (1, 3)] /= H
    packed = np.stack([(b[:, 0] + b[:, 2]) * 0.5, (b[:, 1] + b[:, 3]) * 0.5,
                       b[:, 2] - b[:, 0], b[:, 3] - b[:, 1]], -1)
    packed[:, 0] = packed[:, 0] * (XMAX - XMIN) + XMIN
    packed[:, 1] = packed[:, 1] * (YMAX - YMIN) + YMIN
    # (EBM passthrough) _unpack_boxes_from_ebm + clamp_boxes_torch
    u = packed.copy()
    u[:, 0] = (u[:, 0] - XMIN) / (XMAX - XMIN)
    u[:, 1] = (u[:, 1] - YMIN) / (YMAX - YMIN)
    unp = np.concatenate([u[:, :2] - u[:, 2:] / 2, u[:, :2] + u[:, 2:] / 2], -1)
    unp[:, (0, 2)] *= W
    unp[:, (1, 3)] *= H
    place_ref = np.clip(unp, 0.0, np.array([W, H, W, H], np.float64))

    np.testing.assert_allclose(np.asarray(pick_boxes), pix, rtol=1e-4, atol=1e-4)
    np.testing.assert_allclose(np.asarray(place_boxes), place_ref, rtol=1e-4, atol=1e-4)

    print("KERNEL_OK")
</pallas_src>

<mosaic_0001>
module attributes {stable_mosaic.version = 11 : i64} {
  func.func @_probas_kernel(%arg0: i32, %arg1: memref<16x8xf32, #tpu.memory_space<vmem>>, %arg2: memref<1x8xf32, #tpu.memory_space<vmem>>) attributes {dimension_semantics = [#tpu.dimension_semantics<arbitrary>], iteration_bounds = array<i64: 1>, scalar_prefetch = 0 : i64, scratch_operands = 0 : i64, tpu.core_type = #tpu.core_type<tc>, window_params = [{pipeline_mode = #tpu.pipeline_mode<synchronous>, transform_indices = @transform_0, window_bounds = array<i64: 16, 8>}, {pipeline_mode = #tpu.pipeline_mode<synchronous>, transform_indices = @transform_1, window_bounds = array<i64: 1, 8>}]} {
    %c0 = arith.constant 0 : index
    %c0_0 = arith.constant 0 : index
    %0 = vector.load %arg1[%c0, %c0_0] : memref<16x8xf32, #tpu.memory_space<vmem>>, vector<16x8xf32>
    %cst = arith.constant dense<0xFF800000> : vector<8xf32>
    %1 = vector.multi_reduction <maximumf>, %0, %cst [0] : vector<16x8xf32> to vector<8xf32>
    %2 = vector.shape_cast %1 : vector<8xf32> to vector<1x8xf32>
    %3 = vector.broadcast %2 : vector<1x8xf32> to vector<16x8xf32>
    %4 = arith.subf %0, %3 : vector<16x8xf32>
    %5 = math.exp %4 : vector<16x8xf32>
    %cst_1 = arith.constant dense<0.000000e+00> : vector<8xf32>
    %6 = vector.multi_reduction <add>, %5, %cst_1 [0] : vector<16x8xf32> to vector<8xf32>
    %7 = vector.shape_cast %6 : vector<8xf32> to vector<1x8xf32>
    %8 = vector.extract_strided_slice %5 {offsets = [15, 0], sizes = [1, 8], strides = [1, 1]} : vector<16x8xf32> to vector<1x8xf32>
    %9 = arith.divf %8, %7 : vector<1x8xf32>
    %cst_2 = arith.constant 1.000000e+00 : f32
    %10 = vector.broadcast %cst_2 : f32 to vector<1x8xf32>
    %11 = arith.subf %10, %9 : vector<1x8xf32>
    %c0_3 = arith.constant 0 : index
    %c0_4 = arith.constant 0 : index
    %12 = vector.load %arg2[%c0_3, %c0_4] : memref<1x8xf32, #tpu.memory_space<vmem>>, vector<1x8xf32>
    tpu.vector_store %arg2[%c0_3, %c0_4], %11 {strides = array<i32>} : memref<1x8xf32, #tpu.memory_space<vmem>>, vector<1x8xf32>,
    return
  }
  func.func @transform_0(%arg0: i32) -> (i32, i32) {
    %c0_i32 = arith.constant 0 : i32
    %c0_i32_0 = arith.constant 0 : i32
    %c0_i32_1 = arith.constant 0 : i32
    return %c0_i32, %c0_i32_0 : i32, i32
  }
  func.func @transform_1(%arg0: i32) -> (i32, i32) {
    %c0_i32 = arith.constant 0 : i32
    %c0_i32_0 = arith.constant 0 : i32
    %c0_i32_1 = arith.constant 0 : i32
    return %c0_i32, %c0_i32_0 : i32, i32
  }
}

</mosaic_0001>

<llo_original>
// kernel: tpu_custom_call.1
$region0: #{tpu_custom_call.1}
  #allocation0 [shape = 'u32[]', space=smem, size = 0x4, offset = 0x4, fixed_abs, tag = 'smem constant byte address 0x4 - core index']
  #allocation1 [shape = 'u32[144,128]{1,0:T(1,128)}', space=vmem, size = 0x12000, scoped, tag = 'internal scratch']
  %s0 = inlined_call_operand.vmem [shape: f32[16,8], index: 0, kind: input, shape index: {}]
  %s1 = inlined_call_operand.hbm [shape: f32[1,8], index: 1, kind: output, shape index: {}]
  %s2 = sld [smem:[#allocation0]]
  $region14: #{tpu_custom_call.1} parent=0
    _
  %s4 = ssub.s32 1, %s2
  %s5 = scalar_select 0, %s4, %s2
  $region1: #{tpu_custom_call.1} parent=0
    #allocation2 [shape = 'u8[512]{0}', space=vmem, size = 0x400, scoped, tag = 'output window, operand 0, single buffered']
    #allocation3 [shape = 's32[1]{0}', space=sflag, size = 0x4, scoped, tag = 'scoped memory for tpu_custom_call.1']
    %6 = vsyncpa [#allocation3], 0
    // Predicated region
    $region2: #{tpu_custom_call.1} parent=1 // pred_check
      _
    $region3: #{tpu_custom_call.1} parent=1 // pred_check_branch
      %8 = sbr.rel (0) target = $region5
    $region4: #{tpu_custom_call.1} parent=1 // pred_region
      _
    $region5: #{tpu_custom_call.1} parent=1 // pred_fallthru
      _
    %v9 = vld [vmem:[%s0] sm:$0xff]
    %v10 = vld [vmem:[%s0 + $0x8] sm:$0xff]
    %vm11 = vcmask 64512
    %v12 = vsel %vm11, %v9, -inf
    %v13 = vsel %vm11, %v10, -inf
    %v14 = vmax.f32 %v12, %v13
    %v15 = vrot.slane %v14, 4
    %v16 = vmax.f32 %v14, %v15
    %v17 = vrot.slane %v16, 2
    %v18 = vmax.f32 %v16, %v17
    %v19 = vrot.slane %v18, 1
    %v20 = vmax.f32 %v18, %v19
    %v21 = vsub.f32 %v9, %v20
    %v22 = vsub.f32 %v10, %v20
    %v23 = vmul.f32 %v21, 1.442695
    %v24 = vpow.pop %v23
    %v25 = vmul.f32 %v22, 1.442695
    %v26 = vpow.pop %v25
    %v27 = vsel %vm11, %v24, 0.0
    %v28 = vsel %vm11, %v26, 0.0
    %v29 = vadd.f32 %v27, %v28
    %v30 = vrot.slane %v29, 4
    %v31 = vadd.f32 %v29, %v30
    %v32 = vrot.slane %v31, 2
    %v33 = vadd.f32 %v31, %v32
    %v34 = vrot.slane %v33, 1
    %v35 = vadd.f32 %v33, %v34
    %v36 = vrcp.pop %v35
    %v37 = vmul.f32 %v26, %v36
    %v38 = vsub.f32 1.0, %v37
    %vm39 = vcmask 64519
    %40 = vst.msk [vmem:[#allocation2 - $0x7] sm:$0x80] %vm39, %v38
    // Predicated region
    $region6: #{tpu_custom_call.1} parent=1 // pred_check
      _
    $region7: #{tpu_custom_call.1} parent=1 // pred_check_branch
      %42 = sbr.rel (0) target = $region9
    $region8: #{tpu_custom_call.1} parent=1 // pred_region
      %s44 = ssub.s32 16, 16
      %45 = vsyncadd [#allocation3], %s44
      %s47 = sshll.u32 [#allocation2], 4
      %s48 = int_to_ptr.vmem [resolvable:$true] %s47
      %50 = dma.vmem_to_hbm [thread:$0]  %s48, 16, %s1, [#allocation3]
    $region9: #{tpu_custom_call.1} parent=1 // pred_fallthru
      _
    // Predicated region
    $region10: #{tpu_custom_call.1} parent=1 // pred_check
      _
    $region11: #{tpu_custom_call.1} parent=1 // pred_check_branch
      %52 = sbr.rel (0) target = $region13
    $region12: #{tpu_custom_call.1} parent=1 // pred_region
      %53 = dma.done [#allocation3], 16
    $region13: #{tpu_custom_call.1} parent=1 // pred_fallthru
      _
    %54 = vsyncpa [#allocation3], 1

</llo_original>
